<compile_context>
chip_gen: v7x
topology: tpu7x:2x2x1
jax: 0.10.0
libtpu: 0.0.40
codegen_flags: <defaults>
</compile_context>

<pallas_src>
import numpy as np
import jax
import jax.numpy as jnp
from jax.experimental import pallas as pl
from jax.experimental.pallas import tpu as pltpu


def _sigmoid(v):
    # sigmoid(x) = 0.5 * tanh(0.5 * x) + 0.5 : one EUP push instead of exp+recip
    return 0.5 * jnp.tanh(0.5 * v) + 0.5


def _make_yolo_kernel(na, A, s_h, s_w, anchors_scaled):
    """anchors_scaled[a] = (anchor_w / stride_h, anchor_h / stride_w), Python floats."""

    def kernel(x_ref, off_ref, o_ref):
        # x_ref / o_ref: (N, na, A, Pb)   off_ref: (2, Pb)  [row0 = x_off, row1 = y_off]
        x = x_ref[...]                       # one whole-block load
        x_off = off_ref[0:1, :]              # (1, Pb) -> broadcasts over (N, na, 1, Pb)
        y_off = off_ref[1:2, :]

        # attrs 0, 1: box center -> sigmoid + grid offset, scaled by stride
        o_ref[:, :, 0:1, :] = (_sigmoid(x[:, :, 0:1, :]) + x_off) * s_w
        o_ref[:, :, 1:2, :] = (_sigmoid(x[:, :, 1:2, :]) + y_off) * s_h

        # attrs 2, 3: box size -> exp * per-anchor scale (static scalar constants)
        for a in range(na):
            aw, ah = anchors_scaled[a]
            o_ref[:, a:a + 1, 2:3, :] = jnp.exp(x[:, a:a + 1, 2:3, :]) * (aw * s_w)
            o_ref[:, a:a + 1, 3:4, :] = jnp.exp(x[:, a:a + 1, 3:4, :]) * (ah * s_h)

        # attrs 4..A-1: objectness + class scores -> sigmoid
        o_ref[:, :, 4:, :] = _sigmoid(x[:, :, 4:, :])

    return kernel


def _pick_lane_block(P, N, na, A):
    """Lane-axis (H*W) block size: multiple of 128 dividing P, >=2 chunks when
    possible (feeds both v7x TensorCores), capped ~2 MiB of x per block so
    double-buffered in+out stays far below v7x's 64 MiB VMEM."""
    if P % 128 != 0:
        return P                              # full-extent block (always legal)
    bytes_per_lane = N * na * A * 4
    p_blk = P
    if (P // 2) % 128 == 0:
        p_blk = P // 2                        # guarantee >= 2 parallel grid steps
    cap = 2 * 1024 * 1024
    while p_blk * bytes_per_lane > cap and (p_blk // 2) % 128 == 0:
        p_blk //= 2
    return p_blk


def yolo_layer(x, anchors, netHW, class_count):
    """Pallas implementation of YoloLayer.forward. x: (N, C, H, W) float32."""
    N, C, H, W = x.shape
    stride = (netHW[0] // H, netHW[1] // W)
    gs = (netHW[0] // stride[0], netHW[1] // stride[1])
    A = 5 + class_count
    na = len(anchors)
    P = gs[0] * gs[1]
    R = P * na
    assert C == na * A, "channel count must equal num_anchors * (5 + class_count)"
    assert P == H * W

    s_h, s_w = float(stride[0]), float(stride[1])
    anchors_scaled = tuple((float(a0) / s_h, float(a1) / s_w) for a0, a1 in anchors)

    # zero-copy view of the NCHW input: (N, na, A, H*W), lane axis = H*W
    xv = x.reshape(N, na, A, P).astype(jnp.float32)

    # tiny (2, P) grid-offset table (exact torch.meshgrid(x, y) 'ij' convention
    # of the original module: x_off[p] = p % gs0, y_off[p] = p // gs0).
    p_idx = np.arange(P)
    off = jnp.asarray(np.stack([p_idx % gs[0], p_idx // gs[0]]).astype(np.float32))

    p_blk = _pick_lane_block(P, N, na, A)
    grid = (P // p_blk,)

    out = pl.pallas_call(
        _make_yolo_kernel(na, A, s_h, s_w, anchors_scaled),
        out_shape=jax.ShapeDtypeStruct((N, na, A, P), jnp.float32),
        grid=grid,
        in_specs=[
            pl.BlockSpec((N, na, A, p_blk), lambda j: (0, 0, 0, j)),
            pl.BlockSpec((2, p_blk), lambda j: (0, j)),
        ],
        out_specs=pl.BlockSpec((N, na, A, p_blk), lambda j: (0, 0, 0, j)),
        compiler_params=pltpu.CompilerParams(dimension_semantics=("parallel",)),
    )(xv, off)

    # Back to the PyTorch output layout (N, H*W*num_anchors, bbox_attrs).
    # TODO(synk): consumers that can accept the lane-dense (N, na, A, P) layout
    # should use `out` directly and skip this final HBM-pass transpose.
    return out.transpose(0, 3, 1, 2).reshape(N, R, A)


def yolo_reference_np(x, anchors, netHW, class_count):
    """Pure-numpy replica of the PyTorch forward, for verification."""
    N, C, H, W = x.shape
    stride = (netHW[0] // H, netHW[1] // W)
    gs = (netHW[0] // stride[0], netHW[1] // stride[1])
    A = 5 + class_count
    na = len(anchors)
    v = x.reshape(N, C, gs[0] * gs[1]).transpose(0, 2, 1)
    v = v.reshape(N, gs[0] * gs[1] * na, A).astype(np.float32).copy()

    anc = np.array([(a[0] / stride[0], a[1] / stride[1]) for a in anchors],
                   dtype=np.float32)
    xar = np.arange(gs[1])
    yar = np.arange(gs[0])
    y_off, x_off = np.meshgrid(xar, yar, indexing="ij")
    x_off = x_off.reshape(-1, 1)
    y_off = y_off.reshape(-1, 1)
    xy = np.concatenate([x_off, y_off], axis=1)
    xy = np.tile(xy, (1, na)).reshape(-1, 2).astype(np.float32)

    def sig(z):
        return 1.0 / (1.0 + np.exp(-z))

    v[:, :, 0] = sig(v[:, :, 0])
    v[:, :, 1] = sig(v[:, :, 1])
    v[:, :, :2] += xy[None]
    v[:, :, 4] = sig(v[:, :, 4])
    anc_r = np.tile(anc.reshape(-1, 2), (gs[0] * gs[1], 1))
    v[:, :, 2:4] = np.exp(v[:, :, 2:4]) * anc_r[None]
    v[:, :, 5:] = sig(v[:, :, 5:])
    v[:, :, 0] *= stride[1]
    v[:, :, 1] *= stride[0]
    v[:, :, 2] *= stride[1]
    v[:, :, 3] *= stride[0]
    return v


if __name__ == "__main__":
    # deterministic setup (YoloLayer has no learned weights; anchors are the
    # only "parameters" and are fixed in-script)
    anchors = [(10.0, 13.0), (16.0, 30.0), (33.0, 23.0)]
    class_count = 3                      # bbox_attrs = 8
    N, H, W = 2, 16, 16
    na = len(anchors)
    C = na * (5 + class_count)           # 24
    netHW = (32, 32)                     # stride = (2, 2)

    key = jax.random.PRNGKey(0)
    x = jax.random.normal(key, (N, C, H, W), dtype=jnp.float32)

    fwd = jax.jit(lambda v: yolo_layer(v, anchors, netHW, class_count))
    out = jax.block_until_ready(fwd(x))

    ref = yolo_reference_np(np.asarray(x), anchors, netHW, class_count)
    np.testing.assert_allclose(np.asarray(out), ref, rtol=1e-5, atol=1e-5)
    print("KERNEL_OK")
</pallas_src>

<mosaic_0001>
module attributes {stable_mosaic.version = 11 : i64} {
  func.func @kernel(%arg0: i32, %arg1: memref<2x3x8x128xf32, #tpu.memory_space<vmem>>, %arg2: memref<2x128xf32, #tpu.memory_space<vmem>>, %arg3: memref<2x3x8x128xf32, #tpu.memory_space<vmem>>) attributes {dimension_semantics = [#tpu.dimension_semantics<parallel>], iteration_bounds = array<i64: 2>, scalar_prefetch = 0 : i64, scratch_operands = 0 : i64, tpu.core_type = #tpu.core_type<tc>, window_params = [{transform_indices = @transform_0, window_bounds = array<i64: 2, 3, 8, 128>}, {transform_indices = @transform_1, window_bounds = array<i64: 2, 128>}, {transform_indices = @transform_2, window_bounds = array<i64: 2, 3, 8, 128>}]} {
    %c0 = arith.constant 0 : index
    %c0_0 = arith.constant 0 : index
    %c0_1 = arith.constant 0 : index
    %c0_2 = arith.constant 0 : index
    %0 = vector.load %arg1[%c0, %c0_0, %c0_1, %c0_2] : memref<2x3x8x128xf32, #tpu.memory_space<vmem>>, vector<2x3x8x128xf32>
    %c0_3 = arith.constant 0 : index
    %c0_4 = arith.constant 0 : index
    %1 = vector.load %arg2[%c0_3, %c0_4] : memref<2x128xf32, #tpu.memory_space<vmem>>, vector<1x128xf32>
    %c1 = arith.constant 1 : index
    %c0_5 = arith.constant 0 : index
    %2 = vector.load %arg2[%c1, %c0_5] : memref<2x128xf32, #tpu.memory_space<vmem>>, vector<1x128xf32>
    %3 = vector.extract_strided_slice %0 {offsets = [0, 0, 0, 0], sizes = [2, 3, 1, 128], strides = [1, 1, 1, 1]} : vector<2x3x8x128xf32> to vector<2x3x1x128xf32>
    %cst = arith.constant 5.000000e-01 : f32
    %4 = vector.broadcast %cst : f32 to vector<2x3x1x128xf32>
    %5 = arith.mulf %4, %3 : vector<2x3x1x128xf32>
    %6 = math.tanh %5 : vector<2x3x1x128xf32>
    %cst_6 = arith.constant 5.000000e-01 : f32
    %7 = vector.broadcast %cst_6 : f32 to vector<2x3x1x128xf32>
    %8 = arith.mulf %7, %6 : vector<2x3x1x128xf32>
    %cst_7 = arith.constant 5.000000e-01 : f32
    %9 = vector.broadcast %cst_7 : f32 to vector<2x3x1x128xf32>
    %10 = arith.addf %8, %9 : vector<2x3x1x128xf32>
    %11 = vector.shape_cast %1 : vector<1x128xf32> to vector<1x1x1x128xf32>
    %12 = vector.broadcast %11 : vector<1x1x1x128xf32> to vector<2x3x1x128xf32>
    %13 = arith.addf %10, %12 : vector<2x3x1x128xf32>
    %cst_8 = arith.constant 2.000000e+00 : f32
    %14 = vector.broadcast %cst_8 : f32 to vector<2x3x1x128xf32>
    %15 = arith.mulf %13, %14 : vector<2x3x1x128xf32>
    %c0_9 = arith.constant 0 : index
    %c0_10 = arith.constant 0 : index
    %c0_11 = arith.constant 0 : index
    %c0_12 = arith.constant 0 : index
    %16 = vector.load %arg3[%c0_9, %c0_10, %c0_11, %c0_12] : memref<2x3x8x128xf32, #tpu.memory_space<vmem>>, vector<2x3x1x128xf32>
    tpu.vector_store %arg3[%c0_9, %c0_10, %c0_11, %c0_12], %15 {strides = array<i32>} : memref<2x3x8x128xf32, #tpu.memory_space<vmem>>, vector<2x3x1x128xf32>,
    %17 = vector.extract_strided_slice %0 {offsets = [0, 0, 1, 0], sizes = [2, 3, 1, 128], strides = [1, 1, 1, 1]} : vector<2x3x8x128xf32> to vector<2x3x1x128xf32>
    %cst_13 = arith.constant 5.000000e-01 : f32
    %18 = vector.broadcast %cst_13 : f32 to vector<2x3x1x128xf32>
    %19 = arith.mulf %18, %17 : vector<2x3x1x128xf32>
    %20 = math.tanh %19 : vector<2x3x1x128xf32>
    %cst_14 = arith.constant 5.000000e-01 : f32
    %21 = vector.broadcast %cst_14 : f32 to vector<2x3x1x128xf32>
    %22 = arith.mulf %21, %20 : vector<2x3x1x128xf32>
    %cst_15 = arith.constant 5.000000e-01 : f32
    %23 = vector.broadcast %cst_15 : f32 to vector<2x3x1x128xf32>
    %24 = arith.addf %22, %23 : vector<2x3x1x128xf32>
    %25 = vector.shape_cast %2 : vector<1x128xf32> to vector<1x1x1x128xf32>
    %26 = vector.broadcast %25 : vector<1x1x1x128xf32> to vector<2x3x1x128xf32>
    %27 = arith.addf %24, %26 : vector<2x3x1x128xf32>
    %cst_16 = arith.constant 2.000000e+00 : f32
    %28 = vector.broadcast %cst_16 : f32 to vector<2x3x1x128xf32>
    %29 = arith.mulf %27, %28 : vector<2x3x1x128xf32>
    %c0_17 = arith.constant 0 : index
    %c0_18 = arith.constant 0 : index
    %c1_19 = arith.constant 1 : index
    %c0_20 = arith.constant 0 : index
    %30 = vector.load %arg3[%c0_17, %c0_18, %c1_19, %c0_20] : memref<2x3x8x128xf32, #tpu.memory_space<vmem>>, vector<2x3x1x128xf32>
    tpu.vector_store %arg3[%c0_17, %c0_18, %c1_19, %c0_20], %29 {strides = array<i32>} : memref<2x3x8x128xf32, #tpu.memory_space<vmem>>, vector<2x3x1x128xf32>,
    %31 = vector.extract_strided_slice %0 {offsets = [0, 0, 2, 0], sizes = [2, 1, 1, 128], strides = [1, 1, 1, 1]} : vector<2x3x8x128xf32> to vector<2x1x1x128xf32>
    %32 = math.exp %31 : vector<2x1x1x128xf32>
    %cst_21 = arith.constant 1.000000e+01 : f32
    %33 = vector.broadcast %cst_21 : f32 to vector<2x1x1x128xf32>
    %34 = arith.mulf %32, %33 : vector<2x1x1x128xf32>
    %c0_22 = arith.constant 0 : index
    %c0_23 = arith.constant 0 : index
    %c2 = arith.constant 2 : index
    %c0_24 = arith.constant 0 : index
    %35 = vector.load %arg3[%c0_22, %c0_23, %c2, %c0_24] : memref<2x3x8x128xf32, #tpu.memory_space<vmem>>, vector<2x1x1x128xf32>
    tpu.vector_store %arg3[%c0_22, %c0_23, %c2, %c0_24], %34 {strides = array<i32>} : memref<2x3x8x128xf32, #tpu.memory_space<vmem>>, vector<2x1x1x128xf32>,
    %36 = vector.extract_strided_slice %0 {offsets = [0, 0, 3, 0], sizes = [2, 1, 1, 128], strides = [1, 1, 1, 1]} : vector<2x3x8x128xf32> to vector<2x1x1x128xf32>
    %37 = math.exp %36 : vector<2x1x1x128xf32>
    %cst_25 = arith.constant 1.300000e+01 : f32
    %38 = vector.broadcast %cst_25 : f32 to vector<2x1x1x128xf32>
    %39 = arith.mulf %37, %38 : vector<2x1x1x128xf32>
    %c0_26 = arith.constant 0 : index
    %c0_27 = arith.constant 0 : index
    %c3 = arith.constant 3 : index
    %c0_28 = arith.constant 0 : index
    %40 = vector.load %arg3[%c0_26, %c0_27, %c3, %c0_28] : memref<2x3x8x128xf32, #tpu.memory_space<vmem>>, vector<2x1x1x128xf32>
    tpu.vector_store %arg3[%c0_26, %c0_27, %c3, %c0_28], %39 {strides = array<i32>} : memref<2x3x8x128xf32, #tpu.memory_space<vmem>>, vector<2x1x1x128xf32>,
    %41 = vector.extract_strided_slice %0 {offsets = [0, 1, 2, 0], sizes = [2, 1, 1, 128], strides = [1, 1, 1, 1]} : vector<2x3x8x128xf32> to vector<2x1x1x128xf32>
    %42 = math.exp %41 : vector<2x1x1x128xf32>
    %cst_29 = arith.constant 1.600000e+01 : f32
    %43 = vector.broadcast %cst_29 : f32 to vector<2x1x1x128xf32>
    %44 = arith.mulf %42, %43 : vector<2x1x1x128xf32>
    %c0_30 = arith.constant 0 : index
    %c1_31 = arith.constant 1 : index
    %c2_32 = arith.constant 2 : index
    %c0_33 = arith.constant 0 : index
    %45 = vector.load %arg3[%c0_30, %c1_31, %c2_32, %c0_33] : memref<2x3x8x128xf32, #tpu.memory_space<vmem>>, vector<2x1x1x128xf32>
    tpu.vector_store %arg3[%c0_30, %c1_31, %c2_32, %c0_33], %44 {strides = array<i32>} : memref<2x3x8x128xf32, #tpu.memory_space<vmem>>, vector<2x1x1x128xf32>,
    %46 = vector.extract_strided_slice %0 {offsets = [0, 1, 3, 0], sizes = [2, 1, 1, 128], strides = [1, 1, 1, 1]} : vector<2x3x8x128xf32> to vector<2x1x1x128xf32>
    %47 = math.exp %46 : vector<2x1x1x128xf32>
    %cst_34 = arith.constant 3.000000e+01 : f32
    %48 = vector.broadcast %cst_34 : f32 to vector<2x1x1x128xf32>
    %49 = arith.mulf %47, %48 : vector<2x1x1x128xf32>
    %c0_35 = arith.constant 0 : index
    %c1_36 = arith.constant 1 : index
    %c3_37 = arith.constant 3 : index
    %c0_38 = arith.constant 0 : index
    %50 = vector.load %arg3[%c0_35, %c1_36, %c3_37, %c0_38] : memref<2x3x8x128xf32, #tpu.memory_space<vmem>>, vector<2x1x1x128xf32>
    tpu.vector_store %arg3[%c0_35, %c1_36, %c3_37, %c0_38], %49 {strides = array<i32>} : memref<2x3x8x128xf32, #tpu.memory_space<vmem>>, vector<2x1x1x128xf32>,
    %51 = vector.extract_strided_slice %0 {offsets = [0, 2, 2, 0], sizes = [2, 1, 1, 128], strides = [1, 1, 1, 1]} : vector<2x3x8x128xf32> to vector<2x1x1x128xf32>
    %52 = math.exp %51 : vector<2x1x1x128xf32>
    %cst_39 = arith.constant 3.300000e+01 : f32
    %53 = vector.broadcast %cst_39 : f32 to vector<2x1x1x128xf32>
    %54 = arith.mulf %52, %53 : vector<2x1x1x128xf32>
    %c0_40 = arith.constant 0 : index
    %c2_41 = arith.constant 2 : index
    %c2_42 = arith.constant 2 : index
    %c0_43 = arith.constant 0 : index
    %55 = vector.load %arg3[%c0_40, %c2_41, %c2_42, %c0_43] : memref<2x3x8x128xf32, #tpu.memory_space<vmem>>, vector<2x1x1x128xf32>
    tpu.vector_store %arg3[%c0_40, %c2_41, %c2_42, %c0_43], %54 {strides = array<i32>} : memref<2x3x8x128xf32, #tpu.memory_space<vmem>>, vector<2x1x1x128xf32>,
    %56 = vector.extract_strided_slice %0 {offsets = [0, 2, 3, 0], sizes = [2, 1, 1, 128], strides = [1, 1, 1, 1]} : vector<2x3x8x128xf32> to vector<2x1x1x128xf32>
    %57 = math.exp %56 : vector<2x1x1x128xf32>
    %cst_44 = arith.constant 2.300000e+01 : f32
    %58 = vector.broadcast %cst_44 : f32 to vector<2x1x1x128xf32>
    %59 = arith.mulf %57, %58 : vector<2x1x1x128xf32>
    %c0_45 = arith.constant 0 : index
    %c2_46 = arith.constant 2 : index
    %c3_47 = arith.constant 3 : index
    %c0_48 = arith.constant 0 : index
    %60 = vector.load %arg3[%c0_45, %c2_46, %c3_47, %c0_48] : memref<2x3x8x128xf32, #tpu.memory_space<vmem>>, vector<2x1x1x128xf32>
    tpu.vector_store %arg3[%c0_45, %c2_46, %c3_47, %c0_48], %59 {strides = array<i32>} : memref<2x3x8x128xf32, #tpu.memory_space<vmem>>, vector<2x1x1x128xf32>,
    %61 = vector.extract_strided_slice %0 {offsets = [0, 0, 4, 0], sizes = [2, 3, 4, 128], strides = [1, 1, 1, 1]} : vector<2x3x8x128xf32> to vector<2x3x4x128xf32>
    %cst_49 = arith.constant 5.000000e-01 : f32
    %62 = vector.broadcast %cst_49 : f32 to vector<2x3x4x128xf32>
    %63 = arith.mulf %62, %61 : vector<2x3x4x128xf32>
    %64 = math.tanh %63 : vector<2x3x4x128xf32>
    %cst_50 = arith.constant 5.000000e-01 : f32
    %65 = vector.broadcast %cst_50 : f32 to vector<2x3x4x128xf32>
    %66 = arith.mulf %65, %64 : vector<2x3x4x128xf32>
    %cst_51 = arith.constant 5.000000e-01 : f32
    %67 = vector.broadcast %cst_51 : f32 to vector<2x3x4x128xf32>
    %68 = arith.addf %66, %67 : vector<2x3x4x128xf32>
    %c0_52 = arith.constant 0 : index
    %c0_53 = arith.constant 0 : index
    %c4 = arith.constant 4 : index
    %c0_54 = arith.constant 0 : index
    %69 = vector.load %arg3[%c0_52, %c0_53, %c4, %c0_54] : memref<2x3x8x128xf32, #tpu.memory_space<vmem>>, vector<2x3x4x128xf32>
    tpu.vector_store %arg3[%c0_52, %c0_53, %c4, %c0_54], %68 {strides = array<i32>} : memref<2x3x8x128xf32, #tpu.memory_space<vmem>>, vector<2x3x4x128xf32>,
    return
  }
  func.func @transform_0(%arg0: i32) -> (i32, i32, i32, i32) {
    %c0_i32 = arith.constant 0 : i32
    %c0_i32_0 = arith.constant 0 : i32
    %c0_i32_1 = arith.constant 0 : i32
    %c0_i32_2 = arith.constant 0 : i32
    return %c0_i32, %c0_i32_0, %c0_i32_1, %arg0 : i32, i32, i32, i32
  }
  func.func @transform_1(%arg0: i32) -> (i32, i32) {
    %c0_i32 = arith.constant 0 : i32
    %c0_i32_0 = arith.constant 0 : i32
    return %c0_i32, %arg0 : i32, i32
  }
  func.func @transform_2(%arg0: i32) -> (i32, i32, i32, i32) {
    %c0_i32 = arith.constant 0 : i32
    %c0_i32_0 = arith.constant 0 : i32
    %c0_i32_1 = arith.constant 0 : i32
    %c0_i32_2 = arith.constant 0 : i32
    return %c0_i32, %c0_i32_0, %c0_i32_1, %arg0 : i32, i32, i32, i32
  }
}

</mosaic_0001>

<llo_original>
// kernel: _lambda_.1
$region0: #{_lambda_.1}
  #allocation0 [shape = 'u32[]', space=smem, size = 0x4, offset = 0x4, fixed_abs, tag = 'smem constant byte address 0x4 - core index']
  #allocation1 [shape = 'u32[144,128]{1,0:T(1,128)}', space=vmem, size = 0x12000, scoped, tag = 'internal scratch']
  %s0 = inlined_call_operand.vmem [shape: f32[2,3,8,256], index: 0, kind: input, shape index: {}]
  %s1 = inlined_call_operand.vmem [shape: f32[2,256], index: 1, kind: input, shape index: {}]
  %s2 = inlined_call_operand.vmem [shape: f32[2,3,8,256], index: 2, kind: output, shape index: {}]
  %s3 = sld [smem:[#allocation0]]
  $region113: #{_lambda_.1} parent=0
    _
  %s5 = ssub.s32 1, %s3
  %s6 = scalar_select 0, %s5, %s3
  $region1: #{_lambda_.1} parent=0
    #allocation2 [shape = 'u8[49152]{0}', space=vmem, size = 0xc000, scoped, tag = 'input window, operand 0']
    #allocation3 [shape = 'u8[49152]{0}', space=vmem, size = 0xc000, scoped, tag = 'output window, operand 0']
    loop: start=0, step=1, limit=4
    $region2: #{_lambda_.1} parent=1 // loop_pre_header
      _
    $region3: #{_lambda_.1} parent=1 // loop_header
      %s8 = sphi 0, %s12
      %p9 = scmp.ge.s32.totalorder %s8, 4
      %s18 = sphi 0, %s20
      %s21 = sphi 0, %s18
      %s22 = sphi 0, %s21
      %s38 = sphi 0, %s22
      %s44 = sphi 0, %s46
      %s47 = sphi 0, %s44
      %s48 = sphi 0, %s47
      %s64 = sphi 0, %s48
      %s70 = sphi 0, %s72
      %s73 = sphi 0, %s70
      %s74 = sphi 0, %s73
      %s90 = sphi 0, %s74
    $region4: #{_lambda_.1} parent=1 // loop_header_branch
      %11 = sbr.rel (%p9) target = $region8
    $region5: #{_lambda_.1} parent=1 // loop_body
      %s13 = ssub.s32 %s8, 1
      %s14 = ssub.s32 %s8, 2
      %s15 = sadd.s32 %s8, 1
      %s16 = ssub.s32 %s8, %s15
      %p17 = scmp.eq.s32.totalorder %s16, 0
      %s19 = sadd.s32 %s18, 1
      %s20 = scalar_select %p17, %s18, %s19
      %p23 = pneg %p17
      %p24 = scmp.eq.s32.totalorder %s8, 1
      %p25 = por %p23, %p24
      %p26 = scmp.ne.s32.totalorder %s18, %s21
      %p27 = scmp.eq.s32.totalorder %s8, 0
      %p28 = por %p26, %p27
      %p29 = scmp.ne.s32.totalorder %s18, %s21
      %p30 = scmp.eq.s32.totalorder %s13, 1
      %p31 = por %p29, %p30
      %p32 = scmp.ne.s32.totalorder %s21, %s22
      %p33 = scmp.eq.s32.totalorder %s13, 0
      %p34 = por %p32, %p33
      %p35 = scmp.ne.s32.totalorder %s21, %s22
      %p36 = scmp.eq.s32.totalorder %s14, 1
      %p37 = por %p35, %p36
      %p39 = scmp.ne.s32.totalorder %s22, %s38
      %p40 = scmp.eq.s32.totalorder %s14, 0
      %p41 = por %p39, %p40
      %s42 = ssub.s32 %s8, %s15
      %p43 = scmp.eq.s32.totalorder %s42, 0
      %s45 = sadd.s32 %s44, 1
      %s46 = scalar_select %p43, %s44, %s45
      %p49 = pneg %p43
      %p50 = scmp.eq.s32.totalorder %s8, 1
      %p51 = por %p49, %p50
      %p52 = scmp.ne.s32.totalorder %s44, %s47
      %p53 = scmp.eq.s32.totalorder %s8, 0
      %p54 = por %p52, %p53
      %p55 = scmp.ne.s32.totalorder %s44, %s47
      %p56 = scmp.eq.s32.totalorder %s13, 1
      %p57 = por %p55, %p56
      %p58 = scmp.ne.s32.totalorder %s47, %s48
      %p59 = scmp.eq.s32.totalorder %s13, 0
      %p60 = por %p58, %p59
      %p61 = scmp.ne.s32.totalorder %s47, %s48
      %p62 = scmp.eq.s32.totalorder %s14, 1
      %p63 = por %p61, %p62
      %p65 = scmp.ne.s32.totalorder %s48, %s64
      %p66 = scmp.eq.s32.totalorder %s14, 0
      %p67 = por %p65, %p66
      %s68 = ssub.s32 %s8, %s15
      %p69 = scmp.eq.s32.totalorder %s68, 0
      %s71 = sadd.s32 %s70, 1
      %s72 = scalar_select %p69, %s70, %s71
      %p75 = pneg %p69
      %p76 = scmp.eq.s32.totalorder %s8, 1
      %p77 = por %p75, %p76
      %p78 = scmp.ne.s32.totalorder %s70, %s73
      %p79 = scmp.eq.s32.totalorder %s8, 0
      %p80 = por %p78, %p79
      %p81 = scmp.ne.s32.totalorder %s70, %s73
      %p82 = scmp.eq.s32.totalorder %s13, 1
      %p83 = por %p81, %p82
      %p84 = scmp.ne.s32.totalorder %s73, %s74
      %p85 = scmp.eq.s32.totalorder %s13, 0
      %p86 = por %p84, %p85
      %p87 = scmp.ne.s32.totalorder %s73, %s74
      %p88 = scmp.eq.s32.totalorder %s14, 1
      %p89 = por %p87, %p88
      %p91 = scmp.ne.s32.totalorder %s74, %s90
      %p92 = scmp.eq.s32.totalorder %s14, 0
      %p93 = por %p91, %p92
      %p94 = scmp.le.s32.totalorder 1, %s8
      %p95 = scmp.lt.s32.totalorder %s8, 3
      %p96 = pnand %p94, %p95
      %p97 = pneg %p96
      // Predicated region
      $region9: #{_lambda_.1} parent=5 // pred_check
        _
      $region10: #{_lambda_.1} parent=5 // pred_check_branch
        %99 = sbr.rel (%p96) target = $region12
      $region11: #{_lambda_.1} parent=5 // pred_region
        %s100 = ssub.s32 %s8, 1
      $region12: #{_lambda_.1} parent=5 // pred_fallthru
        _
      %p101 = scmp.lt.s32.totalorder %s8, 2
      // Predicated region
      $region13: #{_lambda_.1} parent=5 // pred_check
        %p102 = pneg %p101
      $region14: #{_lambda_.1} parent=5 // pred_check_branch
        %104 = sbr.rel (%p102) target = $region16
      $region15: #{_lambda_.1} parent=5 // pred_region
        // Predicated region
        $region17: #{_lambda_.1} parent=15 // pred_check
          %p105 = pneg %p28
        $region18: #{_lambda_.1} parent=15 // pred_check_branch
          %107 = sbr.rel (%p105) target = $region20
        $region19: #{_lambda_.1} parent=15 // pred_region
          %s108 = sand.u32 %s18, 1
          %s109 = sand.u32 %s18, 1
          %s110 = smul.addr %s109, 48
          %s111 = scalar_lea.vmem [#allocation2], %s110
          %s112 = smul.addr %s8, 8
          %s113 = scalar_lea.vmem %s0, %s112
          // Predicated region
          $region21: #{_lambda_.1} parent=19 // pred_check
            _
          $region22: #{_lambda_.1} parent=19 // pred_check_branch
            %115 = sbr.rel (0) target = $region24
          $region23: #{_lambda_.1} parent=19 // pred_region
            // Predicated region
            $region25: #{_lambda_.1} parent=23 // pred_check
              _
            $region26: #{_lambda_.1} parent=23 // pred_check_branch
              %117 = sbr.rel (0) target = $region28
            $region27: #{_lambda_.1} parent=23 // pred_region
              // Predicated region
              $region40: #{_lambda_.1} parent=27 // pred_check
                _
              $region41: #{_lambda_.1} parent=27 // pred_check_branch
                %142 = sbr.rel (0) target = $region43
              $region42: #{_lambda_.1} parent=27 // pred_region
                loop: start=0, step=1, limit=1
                $region44: #{_lambda_.1} parent=42 // loop_pre_header
                  _
                $region45: #{_lambda_.1} parent=42 // loop_header
                  %s144 = sphi 0, %s148
                  %p145 = scmp.ge.s32.totalorder %s144, 1
                  %s149 = sphi %s113, %s113
                  %s150 = sphi %s111, %s111
                $region46: #{_lambda_.1} parent=42 // loop_header_branch
                  %147 = sbr.rel (%p145) target = $region50
                $region47: #{_lambda_.1} parent=42 // loop_body
                  %v151 = vld [vmem:[%s149] sm:$0xff]
                  %152 = vst [vmem:[%s150] sm:$0xff] %v151
                  %v153 = vld [vmem:[%s149 + $0x10] sm:$0xff]
                  %154 = vst [vmem:[%s150 + $0x8] sm:$0xff] %v153
                  %v155 = vld [vmem:[%s149 + $0x20] sm:$0xff]
                  %156 = vst [vmem:[%s150 + $0x10] sm:$0xff] %v155
                  %v157 = vld [vmem:[%s149 + $0x30] sm:$0xff]
                  %158 = vst [vmem:[%s150 + $0x18] sm:$0xff] %v157
                  %v159 = vld [vmem:[%s149 + $0x40] sm:$0xff]
                  %160 = vst [vmem:[%s150 + $0x20] sm:$0xff] %v159
                  %v161 = vld [vmem:[%s149 + $0x50] sm:$0xff]
                  %162 = vst [vmem:[%s150 + $0x28] sm:$0xff] %v161
                $region48: #{_lambda_.1} parent=42 // loop_footer
                  %s148 = sadd.s32 1, %s144
                $region49: #{_lambda_.1} parent=42 // loop_footer_branch
                  %143 = sbr.rel target = $region45
                $region50: #{_lambda_.1} parent=42 // loop_exit
                  _
              $region43: #{_lambda_.1} parent=27 // pred_fallthru
                _
              // Predicated region
              $region51: #{_lambda_.1} parent=27 // pred_check
                _
              $region52: #{_lambda_.1} parent=27 // pred_check_branch
                %164 = sbr.rel target = $region54
              $region53: #{_lambda_.1} parent=27 // pred_region
                _
              $region54: #{_lambda_.1} parent=27 // pred_fallthru
                _
            $region28: #{_lambda_.1} parent=23 // pred_fallthru
              _
            // Predicated region
            $region29: #{_lambda_.1} parent=23 // pred_check
              _
            $region30: #{_lambda_.1} parent=23 // pred_check_branch
              %119 = sbr.rel target = $region32
            $region31: #{_lambda_.1} parent=23 // pred_region
              loop: start=0, step=1, limit=1
              $region33: #{_lambda_.1} parent=31 // loop_pre_header
                _
              $region34: #{_lambda_.1} parent=31 // loop_header
                %s122 = sphi 0, %s126
                %p123 = scmp.ge.s32.totalorder %s122, 1
                %s127 = sphi %s113, %s113
                %s128 = sphi %s111, %s111
              $region35: #{_lambda_.1} parent=31 // loop_header_branch
                %125 = sbr.rel (%p123) target = $region39
              $region36: #{_lambda_.1} parent=31 // loop_body
                %v129 = vld [vmem:[%s127] sm:$0xff]
                %130 = vst [vmem:[%s128] sm:$0xff] %v129
                %v131 = vld [vmem:[%s127 + $0x10] sm:$0xff]
                %132 = vst [vmem:[%s128 + $0x8] sm:$0xff] %v131
                %v133 = vld [vmem:[%s127 + $0x20] sm:$0xff]
                %134 = vst [vmem:[%s128 + $0x10] sm:$0xff] %v133
                %v135 = vld [vmem:[%s127 + $0x30] sm:$0xff]
                %136 = vst [vmem:[%s128 + $0x18] sm:$0xff] %v135
                %v137 = vld [vmem:[%s127 + $0x40] sm:$0xff]
                %138 = vst [vmem:[%s128 + $0x20] sm:$0xff] %v137
                %v139 = vld [vmem:[%s127 + $0x50] sm:$0xff]
                %140 = vst [vmem:[%s128 + $0x28] sm:$0xff] %v139
              $region37: #{_lambda_.1} parent=31 // loop_footer
                %s126 = sadd.s32 1, %s122
              $region38: #{_lambda_.1} parent=31 // loop_footer_branch
                %121 = sbr.rel target = $region34
              $region39: #{_lambda_.1} parent=31 // loop_exit
                _
            $region32: #{_lambda_.1} parent=23 // pred_fallthru
              _
          $region24: #{_lambda_.1} parent=19 // pred_fallthru
            _
          %165 = vnop
        $region20: #{_lambda_.1} parent=15 // pred_fallthru
          _
        // Predicated region
        $region55: #{_lambda_.1} parent=15 // pred_check
          %p166 = pneg %p54
        $region56: #{_lambda_.1} parent=15 // pred_check_branch
          %168 = sbr.rel (%p166) target = $region58
        $region57: #{_lambda_.1} parent=15 // pred_region
          %p169 = scmp.lt.s32.totalorder %s8, 1
          %s170 = scalar_select %p169, %s8, 1
          %s171 = smul.addr %s170, 2
          %s172 = scalar_lea.vmem %s1, %s171
        $region58: #{_lambda_.1} parent=15 // pred_fallthru
          _
      $region16: #{_lambda_.1} parent=5 // pred_fallthru
        _
      %p173 = scmp.le.s32.totalorder 1, %s8
      %p174 = scmp.lt.s32.totalorder %s8, 3
      %p175 = pnand %p173, %p174
      %p176 = pneg %p175
      // Predicated region
      $region59: #{_lambda_.1} parent=5 // pred_check
        _
      $region60: #{_lambda_.1} parent=5 // pred_check_branch
        %178 = sbr.rel (%p175) target = $region62
      $region61: #{_lambda_.1} parent=5 // pred_region
        %s179 = ssub.s32 %s8, 1
        %s180 = sand.u32 %s21, 1
        %s181 = sand.u32 %s21, 1
        %s182 = smul.addr %s181, 48
        %s183 = scalar_lea.vmem [#allocation2], %s182
        // Predicated region
        $region63: #{_lambda_.1} parent=61 // pred_check
          %p184 = pneg %p34
        $region64: #{_lambda_.1} parent=61 // pred_check_branch
          %186 = sbr.rel (%p184) target = $region66
        $region65: #{_lambda_.1} parent=61 // pred_region
          _
        $region66: #{_lambda_.1} parent=61 // pred_fallthru
          _
        %s187 = sand.u32 %s21, 1
        %s188 = sand.u32 %s21, 1
        %s189 = smul.addr %s188, 48
        %s190 = scalar_lea.vmem [#allocation2], %s189
        %p191 = pneg %p34
        %p192 = pneg %p31
        %p193 = scmp.lt.s32.totalorder %s13, 1
        %s194 = scalar_select %p193, %s13, 1
        %s195 = smul.addr %s194, 2
        %s196 = scalar_lea.vmem %s1, %s195
        %p197 = pneg %p60
        %p198 = pneg %p57
        %p199 = pneg %p86
        %p200 = pneg %p83
        %s201 = sand.u32 %s73, 1
        %s202 = sand.u32 %s73, 1
        %s203 = smul.addr %s202, 48
        %s204 = scalar_lea.vmem [#allocation3], %s203
        %p205 = scmp.lt.s32.totalorder %s13, 1
        %s206 = scalar_select %p205, %s13, 1
        %s207 = smul.addr %s206, 2
        %s208 = scalar_lea.vmem %s1, %s207
        %v209 = vld [vmem:[%s183] sm:$0xff]
        %v210 = vld [vmem:[%s183 + $0x8] sm:$0xff]
        %v211 = vld [vmem:[%s183 + $0x10] sm:$0xff]
        %v212 = vld [vmem:[%s183 + $0x18] sm:$0xff]
        %v213 = vld [vmem:[%s183 + $0x20] sm:$0xff]
        %v214 = vld [vmem:[%s183 + $0x28] sm:$0xff]
        %v215 = vld [vmem:[%s208] sm:$0x1]
        %v216 = vld [vmem:[%s208 + $0x1] sm:$0x1]
        %v217 = vmul.f32 %v209, 0.5
        %v218 = vmul.f32 %v210, 0.5
        %v219 = vmul.f32 %v211, 0.5
        %v220 = vmul.f32 %v212, 0.5
        %v221 = vmul.f32 %v213, 0.5
        %v222 = vmul.f32 %v214, 0.5
        %v223 = vtanh.pop %v217
        %v224 = vtanh.pop %v218
        %v225 = vtanh.pop %v219
        %v226 = vtanh.pop %v220
        %v227 = vtanh.pop %v221
        %v228 = vtanh.pop %v222
        %v229 = vmul.f32 %v223, 0.5
        %v230 = vmul.f32 %v224, 0.5
        %v231 = vmul.f32 %v225, 0.5
        %v232 = vmul.f32 %v226, 0.5
        %v233 = vmul.f32 %v227, 0.5
        %v234 = vmul.f32 %v228, 0.5
        %v235 = vadd.f32 %v229, 0.5
        %v236 = vadd.f32 %v230, 0.5
        %v237 = vadd.f32 %v231, 0.5
        %v238 = vadd.f32 %v232, 0.5
        %v239 = vadd.f32 %v233, 0.5
        %v240 = vadd.f32 %v234, 0.5
        %v241 = vadd.f32 %v235, %v215
        %v242 = vadd.f32 %v236, %v215
        %v243 = vadd.f32 %v237, %v215
        %v244 = vadd.f32 %v238, %v215
        %v245 = vadd.f32 %v239, %v215
        %v246 = vadd.f32 %v240, %v215
        %v247 = vmul.f32 %v241, 2.0
        %v248 = vmul.f32 %v242, 2.0
        %v249 = vmul.f32 %v243, 2.0
        %v250 = vmul.f32 %v244, 2.0
        %v251 = vmul.f32 %v245, 2.0
        %v252 = vmul.f32 %v246, 2.0
        %253 = vst [vmem:[%s204] sm:$0x1] %v247
        %254 = vst [vmem:[%s204 + $0x8] sm:$0x1] %v248
        %255 = vst [vmem:[%s204 + $0x10] sm:$0x1] %v249
        %256 = vst [vmem:[%s204 + $0x18] sm:$0x1] %v250
        %257 = vst [vmem:[%s204 + $0x20] sm:$0x1] %v251
        %258 = vst [vmem:[%s204 + $0x28] sm:$0x1] %v252
        %v260 = vrot.slane %v216, 7
        %v262 = vadd.f32 %v235, %v260
        %v263 = vadd.f32 %v236, %v260
        %v264 = vadd.f32 %v237, %v260
        %v265 = vadd.f32 %v238, %v260
        %v266 = vadd.f32 %v239, %v260
        %v267 = vadd.f32 %v240, %v260
        %v268 = vmul.f32 %v262, 2.0
        %v269 = vmul.f32 %v263, 2.0
        %v270 = vmul.f32 %v264, 2.0
        %v271 = vmul.f32 %v265, 2.0
        %v272 = vmul.f32 %v266, 2.0
        %v273 = vmul.f32 %v267, 2.0
        %274 = vst [vmem:[%s204] sm:$0x2] %v268
        %275 = vst [vmem:[%s204 + $0x8] sm:$0x2] %v269
        %276 = vst [vmem:[%s204 + $0x10] sm:$0x2] %v270
        %277 = vst [vmem:[%s204 + $0x18] sm:$0x2] %v271
        %278 = vst [vmem:[%s204 + $0x20] sm:$0x2] %v272
        %279 = vst [vmem:[%s204 + $0x28] sm:$0x2] %v273
        %v280 = vmul.f32 %v209, 1.442695
        %v281 = vpow.pop %v280
        %v282 = vmul.f32 %v212, 1.442695
        %v283 = vpow.pop %v282
        %v284 = vmul.f32 %v281, 10.0
        %v285 = vmul.f32 %v283, 10.0
        %286 = vst [vmem:[%s204] sm:$0x4] %v284
        %287 = vst [vmem:[%s204 + $0x18] sm:$0x4] %v285
        %v288 = vmul.f32 %v281, 13.0
        %v289 = vmul.f32 %v283, 13.0
        %290 = vst [vmem:[%s204] sm:$0x8] %v288
        %291 = vst [vmem:[%s204 + $0x18] sm:$0x8] %v289
        %v292 = vmul.f32 %v210, 1.442695
        %v293 = vpow.pop %v292
        %v294 = vmul.f32 %v213, 1.442695
        %v295 = vpow.pop %v294
        %v296 = vmul.f32 %v293, 16.0
        %v297 = vmul.f32 %v295, 16.0
        %s298 = scalar_lea.vmem %s204, 8 [#allocation3]
        %299 = vst [vmem:[%s298] sm:$0x4] %v296
        %300 = vst [vmem:[%s298 + $0x18] sm:$0x4] %v297
        %v301 = vmul.f32 %v293, 30.0
        %v302 = vmul.f32 %v295, 30.0
        %303 = vst [vmem:[%s298] sm:$0x8] %v301
        %304 = vst [vmem:[%s298 + $0x18] sm:$0x8] %v302
        %v305 = vmul.f32 %v211, 1.442695
        %v306 = vpow.pop %v305
        %v307 = vmul.f32 %v214, 1.442695
        %v308 = vpow.pop %v307
        %v309 = vmul.f32 %v306, 33.0
        %v310 = vmul.f32 %v308, 33.0
        %s311 = scalar_lea.vmem %s204, 16 [#allocation3]
        %312 = vst [vmem:[%s311] sm:$0x4] %v309
        %313 = vst [vmem:[%s311 + $0x18] sm:$0x4] %v310
        %v314 = vmul.f32 %v306, 23.0
        %v315 = vmul.f32 %v308, 23.0
        %316 = vst [vmem:[%s311] sm:$0x8] %v314
        %317 = vst [vmem:[%s311 + $0x18] sm:$0x8] %v315
        %318 = vst [vmem:[%s204] sm:$0xf0] %v235
        %319 = vst [vmem:[%s204 + $0x8] sm:$0xf0] %v236
        %320 = vst [vmem:[%s204 + $0x10] sm:$0xf0] %v237
        %321 = vst [vmem:[%s204 + $0x18] sm:$0xf0] %v238
        %322 = vst [vmem:[%s204 + $0x20] sm:$0xf0] %v239
        %323 = vst [vmem:[%s204 + $0x28] sm:$0xf0] %v240
        %s324 = sand.u32 %s73, 1
        %s325 = sand.u32 %s73, 1
        %s326 = smul.addr %s325, 48
        %s327 = scalar_lea.vmem [#allocation3], %s326
        // Predicated region
        $region67: #{_lambda_.1} parent=61 // pred_check
          %p328 = pneg %p83
        $region68: #{_lambda_.1} parent=61 // pred_check_branch
          %330 = sbr.rel (%p328) target = $region70
        $region69: #{_lambda_.1} parent=61 // pred_region
          %s331 = smul.addr %s13, 8
          %s332 = scalar_lea.vmem %s2, %s331
          // Predicated region
          $region71: #{_lambda_.1} parent=69 // pred_check
            _
          $region72: #{_lambda_.1} parent=69 // pred_check_branch
            %334 = sbr.rel (0) target = $region74
          $region73: #{_lambda_.1} parent=69 // pred_region
            // Predicated region
            $region75: #{_lambda_.1} parent=73 // pred_check
              _
            $region76: #{_lambda_.1} parent=73 // pred_check_branch
              %336 = sbr.rel (0) target = $region78
            $region77: #{_lambda_.1} parent=73 // pred_region
              // Predicated region
              $region90: #{_lambda_.1} parent=77 // pred_check
                _
              $region91: #{_lambda_.1} parent=77 // pred_check_branch
                %361 = sbr.rel (0) target = $region93
              $region92: #{_lambda_.1} parent=77 // pred_region
                loop: start=0, step=1, limit=1
                $region94: #{_lambda_.1} parent=92 // loop_pre_header
                  _
                $region95: #{_lambda_.1} parent=92 // loop_header
                  %s363 = sphi 0, %s367
                  %p364 = scmp.ge.s32.totalorder %s363, 1
                  %s368 = sphi %s327, %s327
                  %s369 = sphi %s332, %s332
                $region96: #{_lambda_.1} parent=92 // loop_header_branch
                  %366 = sbr.rel (%p364) target = $region100
                $region97: #{_lambda_.1} parent=92 // loop_body
                  %v370 = vld [vmem:[%s368] sm:$0xff]
                  %371 = vst [vmem:[%s369] sm:$0xff] %v370
                  %v372 = vld [vmem:[%s368 + $0x8] sm:$0xff]
                  %373 = vst [vmem:[%s369 + $0x10] sm:$0xff] %v372
                  %v374 = vld [vmem:[%s368 + $0x10] sm:$0xff]
                  %375 = vst [vmem:[%s369 + $0x20] sm:$0xff] %v374
                  %v376 = vld [vmem:[%s368 + $0x18] sm:$0xff]
                  %377 = vst [vmem:[%s369 + $0x30] sm:$0xff] %v376
                  %v378 = vld [vmem:[%s368 + $0x20] sm:$0xff]
                  %379 = vst [vmem:[%s369 + $0x40] sm:$0xff] %v378
                  %v380 = vld [vmem:[%s368 + $0x28] sm:$0xff]
                  %381 = vst [vmem:[%s369 + $0x50] sm:$0xff] %v380
                $region98: #{_lambda_.1} parent=92 // loop_footer
                  %s367 = sadd.s32 1, %s363
                $region99: #{_lambda_.1} parent=92 // loop_footer_branch
                  %362 = sbr.rel target = $region95
                $region100: #{_lambda_.1} parent=92 // loop_exit
                  _
              $region93: #{_lambda_.1} parent=77 // pred_fallthru
                _
              // Predicated region
              $region101: #{_lambda_.1} parent=77 // pred_check
                _
              $region102: #{_lambda_.1} parent=77 // pred_check_branch
                %383 = sbr.rel target = $region104
              $region103: #{_lambda_.1} parent=77 // pred_region
                _
              $region104: #{_lambda_.1} parent=77 // pred_fallthru
                _
            $region78: #{_lambda_.1} parent=73 // pred_fallthru
              _
            // Predicated region
            $region79: #{_lambda_.1} parent=73 // pred_check
              _
            $region80: #{_lambda_.1} parent=73 // pred_check_branch
              %338 = sbr.rel target = $region82
            $region81: #{_lambda_.1} parent=73 // pred_region
              loop: start=0, step=1, limit=1
              $region83: #{_lambda_.1} parent=81 // loop_pre_header
                _
              $region84: #{_lambda_.1} parent=81 // loop_header
                %s341 = sphi 0, %s345
                %p342 = scmp.ge.s32.totalorder %s341, 1
                %s346 = sphi %s327, %s327
                %s347 = sphi %s332, %s332
              $region85: #{_lambda_.1} parent=81 // loop_header_branch
                %344 = sbr.rel (%p342) target = $region89
              $region86: #{_lambda_.1} parent=81 // loop_body
                %v348 = vld [vmem:[%s346] sm:$0xff]
                %349 = vst [vmem:[%s347] sm:$0xff] %v348
                %v350 = vld [vmem:[%s346 + $0x8] sm:$0xff]
                %351 = vst [vmem:[%s347 + $0x10] sm:$0xff] %v350
                %v352 = vld [vmem:[%s346 + $0x10] sm:$0xff]
                %353 = vst [vmem:[%s347 + $0x20] sm:$0xff] %v352
                %v354 = vld [vmem:[%s346 + $0x18] sm:$0xff]
                %355 = vst [vmem:[%s347 + $0x30] sm:$0xff] %v354
                %v356 = vld [vmem:[%s346 + $0x20] sm:$0xff]
                %357 = vst [vmem:[%s347 + $0x40] sm:$0xff] %v356
                %v358 = vld [vmem:[%s346 + $0x28] sm:$0xff]
                %359 = vst [vmem:[%s347 + $0x50] sm:$0xff] %v358
              $region87: #{_lambda_.1} parent=81 // loop_footer
                %s345 = sadd.s32 1, %s341
              $region88: #{_lambda_.1} parent=81 // loop_footer_branch
                %340 = sbr.rel target = $region84
              $region89: #{_lambda_.1} parent=81 // loop_exit
                _
            $region82: #{_lambda_.1} parent=73 // pred_fallthru
              _
          $region74: #{_lambda_.1} parent=69 // pred_fallthru
            _
          %384 = vnop
        $region70: #{_lambda_.1} parent=61 // pred_fallthru
          _
      $region62: #{_lambda_.1} parent=5 // pred_fallthru
        _
      %p385 = scmp.le.s32.totalorder 2, %s8
      // Predicated region
      $region105: #{_lambda_.1} parent=5 // pred_check
        %p386 = pneg %p385
      $region106: #{_lambda_.1} parent=5 // pred_check_branch
        %388 = sbr.rel (%p386) target = $region108
      $region107: #{_lambda_.1} parent=5 // pred_region
        %s389 = ssub.s32 %s8, 2
        // Predicated region
        $region109: #{_lambda_.1} parent=107 // pred_check
          %p390 = pneg %p89
        $region110: #{_lambda_.1} parent=107 // pred_check_branch
          %392 = sbr.rel (%p390) target = $region112
        $region111: #{_lambda_.1} parent=107 // pred_region
          %s393 = sand.u32 %s74, 1
          %s394 = sand.u32 %s74, 1
          %s395 = smul.addr %s394, 48
          %s396 = scalar_lea.vmem [#allocation3], %s395
        $region112: #{_lambda_.1} parent=107 // pred_fallthru
          _
      $region108: #{_lambda_.1} parent=5 // pred_fallthru
        _
    $region6: #{_lambda_.1} parent=1 // loop_footer
      %s12 = sadd.s32 1, %s8
    $region7: #{_lambda_.1} parent=1 // loop_footer_branch
      %7 = sbr.rel target = $region3
    $region8: #{_lambda_.1} parent=1 // loop_exit
      _

</llo_original>
